<compile_context>
chip_gen: v6e
topology: v6e:2x2x1
jax: 0.10.0
libtpu: 0.0.40
codegen_flags: <defaults>
</compile_context>

<pallas_src>
import functools

import jax
import jax.numpy as jnp
from jax import lax
from jax.experimental import pallas as pl
from jax.experimental.pallas import tpu as pltpu

_LANES = 128
_SUBLANES = 8
_MAX_TILE_ROWS = 2048   # (2048, 128) f32 block = 1 MiB per input
_NUM_CHUNKS = 2         # "parallel" leading grid axis (2 TCs on v7x)


def _round_up(x, m):
    return (x + m - 1) // m * m


def _relative_l1_kernel(fake_ref, target_ref, out_ref, *, eps, n_elems,
                        tile_rows, steps_per_chunk):
    c = pl.program_id(0)   # parallel chunk (per-TensorCore on v7x)
    i = pl.program_id(1)   # sequential ("arbitrary") step within the chunk

    @pl.when(i == 0)
    def _():
        out_ref[...] = jnp.zeros_like(out_ref)

    # Logical (unclamped) block index; the index_map clamps the DMA target so
    # it is always in-bounds, and the mask below zeroes out everything that is
    # logically past the real data (tail rows, duplicated clamped blocks,
    # alignment padding).
    block = c * steps_per_chunk + i

    fake = fake_ref[...].astype(jnp.float32)
    target = target_ref[...].astype(jnp.float32)

    row = lax.broadcasted_iota(jnp.int32, (tile_rows, _LANES), 0)
    lane = lax.broadcasted_iota(jnp.int32, (tile_rows, _LANES), 1)
    local_flat = row * _LANES + lane
    remaining = n_elems - block * (tile_rows * _LANES)
    mask = local_flat < remaining

    fake = jnp.where(mask, fake, 0.0)
    target = jnp.where(mask, target, 0.0)

    # |fake/base - target/base| == |(fake - target) / base|
    inv_base = 1.0 / (target + eps)          # masked lanes: 1/eps * 0 = 0
    diff = jnp.abs((fake - target) * inv_base)

    # Fold rows into a vreg-shaped (8, 128) partial sum: the reshape matches
    # the (8, 128) vreg tiling, so this is just a chain of elementwise vreg
    # adds (VPU), no cross-lane reduce inside the loop.
    partial = jnp.sum(
        diff.reshape(tile_rows // _SUBLANES, _SUBLANES, _LANES), axis=0)
    out_ref[...] += partial


def relative_l1(fake, target, eps=0.01):
    """Pallas implementation of RelativeL1 (mean reduction). Returns scalar f32."""
    assert fake.shape == target.shape
    n_elems = fake.size

    fake_flat = fake.reshape(-1)
    target_flat = target.reshape(-1)

    # Keep native dtype (cast happens inside the kernel).  Only pad when the
    # element count is not (8*128)-aligned; padded zeros are masked anyway.
    chunk = _SUBLANES * _LANES
    if n_elems % chunk:
        pad = chunk - n_elems % chunk
        fake_flat = jnp.pad(fake_flat, (0, pad))
        target_flat = jnp.pad(target_flat, (0, pad))

    rows = fake_flat.size // _LANES
    fake_2d = fake_flat.reshape(rows, _LANES)
    target_2d = target_flat.reshape(rows, _LANES)

    tile_rows = min(_MAX_TILE_ROWS, rows)          # rows % 8 == 0 guaranteed
    total_blocks = pl.cdiv(rows, tile_rows)
    steps_per_chunk = pl.cdiv(total_blocks, _NUM_CHUNKS)
    last_block = total_blocks - 1

    def in_map(c, i):
        # Clamp so the DMA never targets a fully out-of-range block; the
        # kernel masks the duplicated data to zero.
        return (jnp.minimum(c * steps_per_chunk + i, last_block), 0)

    kernel = functools.partial(
        _relative_l1_kernel,
        eps=float(eps),
        n_elems=n_elems,
        tile_rows=tile_rows,
        steps_per_chunk=steps_per_chunk,
    )

    partials = pl.pallas_call(
        kernel,
        out_shape=jax.ShapeDtypeStruct((_NUM_CHUNKS * _SUBLANES, _LANES),
                                       jnp.float32),
        grid_spec=pltpu.PrefetchScalarGridSpec(
            num_scalar_prefetch=0,
            grid=(_NUM_CHUNKS, steps_per_chunk),
            in_specs=[
                pl.BlockSpec((tile_rows, _LANES), in_map),
                pl.BlockSpec((tile_rows, _LANES), in_map),
            ],
            out_specs=pl.BlockSpec((_SUBLANES, _LANES), lambda c, i: (c, 0)),
        ),
        compiler_params=pltpu.CompilerParams(
            dimension_semantics=("parallel", "arbitrary"),
            vmem_limit_bytes=32 << 20,
        ),
    )(fake_2d, target_2d)

    # Single cross-lane reduction + mean, on a tiny (16, 128) array.
    return jnp.sum(partials) / jnp.float32(n_elems)


def relative_l1_reference(fake, target, eps=0.01):
    base = target + eps
    return jnp.mean(jnp.abs(fake / base - target / base))


if __name__ == "__main__":
    key = jax.random.PRNGKey(0)
    k1, k2 = jax.random.split(key)

    # Small NCHW-shaped inputs (image batch fed to the loss).
    fake = jax.random.normal(k1, (2, 4, 16, 16), dtype=jnp.float32)
    target = jax.random.normal(k2, (2, 4, 16, 16), dtype=jnp.float32)

    loss = relative_l1(fake, target)
    loss = jax.block_until_ready(loss)
    ref = relative_l1_reference(fake, target)
    assert jnp.allclose(loss, ref, rtol=1e-4, atol=1e-6), (loss, ref)

    # Extra check: unaligned element count exercises the pad + tail-mask path.
    k3, k4 = jax.random.split(k1)
    fake2 = jax.random.normal(k3, (2, 3, 5, 7), dtype=jnp.float32)
    target2 = jax.random.normal(k4, (2, 3, 5, 7), dtype=jnp.float32)
    loss2 = jax.block_until_ready(relative_l1(fake2, target2))
    ref2 = relative_l1_reference(fake2, target2)
    assert jnp.allclose(loss2, ref2, rtol=1e-4, atol=1e-6), (loss2, ref2)

    print("KERNEL_OK")
</pallas_src>

<mosaic_0001>
module attributes {stable_mosaic.version = 11 : i64} {
  func.func @_relative_l1_kernel(%arg0: i32, %arg1: i32, %arg2: memref<16x128xf32, #tpu.memory_space<vmem>>, %arg3: memref<16x128xf32, #tpu.memory_space<vmem>>, %arg4: memref<8x128xf32, #tpu.memory_space<vmem>>) attributes {dimension_semantics = [#tpu.dimension_semantics<parallel>, #tpu.dimension_semantics<arbitrary>], iteration_bounds = array<i64: 2, 1>, scalar_prefetch = 0 : i64, scratch_operands = 0 : i64, tpu.core_type = #tpu.core_type<tc>, window_params = [{transform_indices = @transform_0, window_bounds = array<i64: 16, 128>}, {transform_indices = @transform_1, window_bounds = array<i64: 16, 128>}, {transform_indices = @transform_2, window_bounds = array<i64: 8, 128>}]} {
    %c0_i32 = arith.constant 0 : i32
    %0 = arith.cmpi eq, %arg1, %c0_i32 : i32
    %1 = arith.extui %0 : i1 to i32
    %c0_i32_0 = arith.constant 0 : i32
    %2 = arith.cmpi ne, %1, %c0_i32_0 : i32
    scf.if %2 {
      %cst_13 = arith.constant 0.000000e+00 : f32
      %32 = vector.broadcast %cst_13 : f32 to vector<8x128xf32>
      %c0_14 = arith.constant 0 : index
      %c0_15 = arith.constant 0 : index
      %33 = vector.load %arg4[%c0_14, %c0_15] : memref<8x128xf32, #tpu.memory_space<vmem>>, vector<8x128xf32>
      tpu.vector_store %arg4[%c0_14, %c0_15], %32 {strides = array<i32>} : memref<8x128xf32, #tpu.memory_space<vmem>>, vector<8x128xf32>,
    } else {
    }
    %c1_i32 = arith.constant 1 : i32
    %3 = arith.muli %arg0, %c1_i32 : i32
    %4 = arith.addi %3, %arg1 : i32
    %c0 = arith.constant 0 : index
    %c0_1 = arith.constant 0 : index
    %5 = vector.load %arg2[%c0, %c0_1] : memref<16x128xf32, #tpu.memory_space<vmem>>, vector<16x128xf32>
    %c0_2 = arith.constant 0 : index
    %c0_3 = arith.constant 0 : index
    %6 = vector.load %arg3[%c0_2, %c0_3] : memref<16x128xf32, #tpu.memory_space<vmem>>, vector<16x128xf32>
    %7 = tpu.iota {dimensions = array<i32: 0>} : vector<16x128xi32>
    %8 = tpu.iota {dimensions = array<i32: 1>} : vector<16x128xi32>
    %c128_i32 = arith.constant 128 : i32
    %9 = vector.broadcast %c128_i32 : i32 to vector<16x128xi32>
    %10 = arith.muli %7, %9 : vector<16x128xi32>
    %11 = arith.addi %10, %8 : vector<16x128xi32>
    %c2048_i32 = arith.constant 2048 : i32
    %12 = arith.muli %4, %c2048_i32 : i32
    %c2048_i32_4 = arith.constant 2048 : i32
    %13 = arith.subi %c2048_i32_4, %12 : i32
    %14 = vector.broadcast %13 : i32 to vector<16x128xi32>
    %15 = arith.cmpi slt, %11, %14 : vector<16x128xi32>
    %cst = arith.constant 0.000000e+00 : f32
    %16 = vector.broadcast %cst : f32 to vector<16x128xf32>
    %17 = arith.select %15, %5, %16 : vector<16x128xi1>, vector<16x128xf32>
    %cst_5 = arith.constant 0.000000e+00 : f32
    %18 = vector.broadcast %cst_5 : f32 to vector<16x128xf32>
    %19 = arith.select %15, %6, %18 : vector<16x128xi1>, vector<16x128xf32>
    %cst_6 = arith.constant 0.00999999977 : f32
    %20 = vector.broadcast %cst_6 : f32 to vector<16x128xf32>
    %21 = arith.addf %19, %20 : vector<16x128xf32>
    %cst_7 = arith.constant 1.000000e+00 : f32
    %22 = vector.broadcast %cst_7 : f32 to vector<16x128xf32>
    %23 = arith.divf %22, %21 : vector<16x128xf32>
    %24 = arith.subf %17, %19 : vector<16x128xf32>
    %25 = arith.mulf %24, %23 : vector<16x128xf32>
    %26 = math.absf %25 : vector<16x128xf32>
    %27 = vector.shape_cast %26 : vector<16x128xf32> to vector<2x8x128xf32>
    %cst_8 = arith.constant dense<0.000000e+00> : vector<8x128xf32>
    %28 = vector.multi_reduction <add>, %27, %cst_8 [0] : vector<2x8x128xf32> to vector<8x128xf32>
    %c0_9 = arith.constant 0 : index
    %c0_10 = arith.constant 0 : index
    %29 = vector.load %arg4[%c0_9, %c0_10] : memref<8x128xf32, #tpu.memory_space<vmem>>, vector<8x128xf32>
    %30 = arith.addf %29, %28 : vector<8x128xf32>
    %c0_11 = arith.constant 0 : index
    %c0_12 = arith.constant 0 : index
    %31 = vector.load %arg4[%c0_11, %c0_12] : memref<8x128xf32, #tpu.memory_space<vmem>>, vector<8x128xf32>
    tpu.vector_store %arg4[%c0_11, %c0_12], %30 {strides = array<i32>} : memref<8x128xf32, #tpu.memory_space<vmem>>, vector<8x128xf32>,
    return
  }
  func.func @transform_0(%arg0: i32, %arg1: i32) -> (i32, i32) {
    %c1_i32 = arith.constant 1 : i32
    %0 = arith.muli %arg0, %c1_i32 : i32
    %1 = arith.addi %0, %arg1 : i32
    %c0_i32 = arith.constant 0 : i32
    %2 = arith.minsi %1, %c0_i32 : i32
    %c0_i32_0 = arith.constant 0 : i32
    %c0_i32_1 = arith.constant 0 : i32
    return %2, %c0_i32_0 : i32, i32
  }
  func.func @transform_1(%arg0: i32, %arg1: i32) -> (i32, i32) {
    %c1_i32 = arith.constant 1 : i32
    %0 = arith.muli %arg0, %c1_i32 : i32
    %1 = arith.addi %0, %arg1 : i32
    %c0_i32 = arith.constant 0 : i32
    %2 = arith.minsi %1, %c0_i32 : i32
    %c0_i32_0 = arith.constant 0 : i32
    %c0_i32_1 = arith.constant 0 : i32
    return %2, %c0_i32_0 : i32, i32
  }
  func.func @transform_2(%arg0: i32, %arg1: i32) -> (i32, i32) {
    %c0_i32 = arith.constant 0 : i32
    %c0_i32_0 = arith.constant 0 : i32
    return %arg0, %c0_i32 : i32, i32
  }
}

</mosaic_0001>

<llo_original>
// kernel: tpu_custom_call.1
$region0: #{tpu_custom_call.1}
  #allocation0 [shape = 'u32[]', space=smem, size = 0x4, offset = 0x4, fixed_abs, tag = 'smem constant byte address 0x4 - core index']
  #allocation1 [shape = 'u32[144,128]{1,0:T(1,128)}', space=vmem, size = 0x12000, scoped, tag = 'internal scratch']
  %s0 = inlined_call_operand.hbm [shape: f32[16,128], index: 0, kind: input, shape index: {}]
  %s1 = inlined_call_operand.hbm [shape: f32[16,128], index: 1, kind: input, shape index: {}]
  %s2 = inlined_call_operand.hbm [shape: f32[16,128], index: 2, kind: output, shape index: {}]
  %s3 = sld [smem:[#allocation0]]
  $region53: #{tpu_custom_call.1} parent=0
    _
  %s5 = ssub.s32 1, %s3
  %s6 = scalar_select 0, %s5, %s3
  $region1: #{tpu_custom_call.1} parent=0
    #allocation2 [shape = 'u8[16384]{0}', space=vmem, size = 0x4000, scoped, tag = 'input window, operand 0']
    #allocation3 [shape = 's32[2]{0}', space=sflag, size = 0x8, scoped, tag = 'scoped memory for tpu_custom_call.1']
    #allocation4 [shape = 's32[2]{0}', space=sflag, size = 0x8, scoped, tag = 'scoped memory for tpu_custom_call.1']
    #allocation5 [shape = 'u8[16384]{0}', space=vmem, size = 0x4000, scoped, tag = 'input window, operand 1']
    #allocation6 [shape = 's32[2]{0}', space=sflag, size = 0x8, scoped, tag = 'scoped memory for tpu_custom_call.1']
    #allocation7 [shape = 'u8[8192]{0}', space=vmem, size = 0x2000, scoped, tag = 'output window, operand 0']
    %7 = vsyncpa [#allocation3], 0
    %s8 = scalar_lea.sflag [#allocation3], 1
    %9 = vsyncpa %s8, 0
    %10 = vsyncpa [#allocation6], 0
    %s11 = scalar_lea.sflag [#allocation6], 1
    %12 = vsyncpa %s11, 0
    %13 = vsyncpa [#allocation4], 0
    %s14 = scalar_lea.sflag [#allocation4], 1
    %15 = vsyncpa %s14, 0
    loop: start=0, step=1, limit=4
    $region2: #{tpu_custom_call.1} parent=1 // loop_pre_header
      _
    $region3: #{tpu_custom_call.1} parent=1 // loop_header
      %s17 = sphi 0, %s21
      %p18 = scmp.ge.s32.totalorder %s17, 4
      %s24 = sphi 0, %s36
      %s25 = sphi 0, %s32
      %s26 = sphi 0, %s24
      %s27 = sphi 0, %s25
      %s28 = sphi 0, %s26
      %s29 = sphi 0, %s27
      %s45 = sphi 0, %s47
      %s48 = sphi 0, %s45
      %s49 = sphi 0, %s48
      %s65 = sphi 0, %s49
      %s77 = sphi 0, %s79
      %s80 = sphi 0, %s77
      %s81 = sphi 0, %s80
      %s97 = sphi 0, %s81
      %s103 = sphi 0, %s105
      %s106 = sphi 0, %s103
      %s107 = sphi 0, %s106
      %s123 = sphi 0, %s107
    $region4: #{tpu_custom_call.1} parent=1 // loop_header_branch
      %20 = sbr.rel (%p18) target = $region8
    $region5: #{tpu_custom_call.1} parent=1 // loop_body
      %s22 = ssub.s32 %s17, 1
      %s23 = ssub.s32 %s17, 2
      %s30 = sadd.s32 1, %s25
      %p31 = scmp.ge.s32.totalorder %s30, 1
      %s32 = scalar_select %p31, 0, %s30
      %s33 = sadd.s32 1, %s24
      %s34 = scalar_select %p31, %s33, %s24
      %p35 = scmp.ge.s32.totalorder %s34, 2
      %s36 = scalar_select %p35, 0, %s34
      %s37 = sadd.s32 %s24, %s25
      %p38 = scmp.lt.s32.totalorder %s37, 0
      %s39 = scalar_select %p38, %s37, 0
      %s40 = sadd.s32 %s36, %s32
      %p41 = scmp.lt.s32.totalorder %s40, 0
      %s42 = scalar_select %p41, %s40, 0
      %s43 = ssub.s32 %s39, %s42
      %p44 = scmp.eq.s32.totalorder %s43, 0
      %s46 = sadd.s32 %s45, 1
      %s47 = scalar_select %p44, %s45, %s46
      %p50 = pneg %p44
      %p51 = scmp.eq.s32.totalorder %s17, 1
      %p52 = por %p50, %p51
      %p53 = scmp.ne.s32.totalorder %s45, %s48
      %p54 = scmp.eq.s32.totalorder %s17, 0
      %p55 = por %p53, %p54
      %p56 = scmp.ne.s32.totalorder %s45, %s48
      %p57 = scmp.eq.s32.totalorder %s22, 1
      %p58 = por %p56, %p57
      %p59 = scmp.ne.s32.totalorder %s48, %s49
      %p60 = scmp.eq.s32.totalorder %s22, 0
      %p61 = por %p59, %p60
      %p62 = scmp.ne.s32.totalorder %s48, %s49
      %p63 = scmp.eq.s32.totalorder %s23, 1
      %p64 = por %p62, %p63
      %p66 = scmp.ne.s32.totalorder %s49, %s65
      %p67 = scmp.eq.s32.totalorder %s23, 0
      %p68 = por %p66, %p67
      %s69 = sadd.s32 %s24, %s25
      %p70 = scmp.lt.s32.totalorder %s69, 0
      %s71 = scalar_select %p70, %s69, 0
      %s72 = sadd.s32 %s36, %s32
      %p73 = scmp.lt.s32.totalorder %s72, 0
      %s74 = scalar_select %p73, %s72, 0
      %s75 = ssub.s32 %s71, %s74
      %p76 = scmp.eq.s32.totalorder %s75, 0
      %s78 = sadd.s32 %s77, 1
      %s79 = scalar_select %p76, %s77, %s78
      %p82 = pneg %p76
      %p83 = scmp.eq.s32.totalorder %s17, 1
      %p84 = por %p82, %p83
      %p85 = scmp.ne.s32.totalorder %s77, %s80
      %p86 = scmp.eq.s32.totalorder %s17, 0
      %p87 = por %p85, %p86
      %p88 = scmp.ne.s32.totalorder %s77, %s80
      %p89 = scmp.eq.s32.totalorder %s22, 1
      %p90 = por %p88, %p89
      %p91 = scmp.ne.s32.totalorder %s80, %s81
      %p92 = scmp.eq.s32.totalorder %s22, 0
      %p93 = por %p91, %p92
      %p94 = scmp.ne.s32.totalorder %s80, %s81
      %p95 = scmp.eq.s32.totalorder %s23, 1
      %p96 = por %p94, %p95
      %p98 = scmp.ne.s32.totalorder %s81, %s97
      %p99 = scmp.eq.s32.totalorder %s23, 0
      %p100 = por %p98, %p99
      %s101 = ssub.s32 %s24, %s36
      %p102 = scmp.eq.s32.totalorder %s101, 0
      %s104 = sadd.s32 %s103, 1
      %s105 = scalar_select %p102, %s103, %s104
      %p108 = pneg %p102
      %p109 = scmp.eq.s32.totalorder %s17, 1
      %p110 = por %p108, %p109
      %p111 = scmp.ne.s32.totalorder %s103, %s106
      %p112 = scmp.eq.s32.totalorder %s17, 0
      %p113 = por %p111, %p112
      %p114 = scmp.ne.s32.totalorder %s103, %s106
      %p115 = scmp.eq.s32.totalorder %s22, 1
      %p116 = por %p114, %p115
      %p117 = scmp.ne.s32.totalorder %s106, %s107
      %p118 = scmp.eq.s32.totalorder %s22, 0
      %p119 = por %p117, %p118
      %p120 = scmp.ne.s32.totalorder %s106, %s107
      %p121 = scmp.eq.s32.totalorder %s23, 1
      %p122 = por %p120, %p121
      %p124 = scmp.ne.s32.totalorder %s107, %s123
      %p125 = scmp.eq.s32.totalorder %s23, 0
      %p126 = por %p124, %p125
      %p127 = scmp.le.s32.totalorder 1, %s17
      %p128 = scmp.lt.s32.totalorder %s17, 3
      %p129 = pnand %p127, %p128
      %p130 = pneg %p129
      // Predicated region
      $region9: #{tpu_custom_call.1} parent=5 // pred_check
        _
      $region10: #{tpu_custom_call.1} parent=5 // pred_check_branch
        %132 = sbr.rel (%p129) target = $region12
      $region11: #{tpu_custom_call.1} parent=5 // pred_region
        %s133 = ssub.s32 %s17, 1
      $region12: #{tpu_custom_call.1} parent=5 // pred_fallthru
        _
      %p134 = scmp.lt.s32.totalorder %s17, 2
      // Predicated region
      $region13: #{tpu_custom_call.1} parent=5 // pred_check
        %p135 = pneg %p134
      $region14: #{tpu_custom_call.1} parent=5 // pred_check_branch
        %137 = sbr.rel (%p135) target = $region16
      $region15: #{tpu_custom_call.1} parent=5 // pred_region
        // Predicated region
        $region17: #{tpu_custom_call.1} parent=15 // pred_check
          %p138 = pneg %p55
        $region18: #{tpu_custom_call.1} parent=15 // pred_check_branch
          %140 = sbr.rel (%p138) target = $region20
        $region19: #{tpu_custom_call.1} parent=15 // pred_region
          %s141 = sand.u32 %s45, 1
          %s142 = scalar_lea.sflag [#allocation3], %s141
          %s143 = sand.u32 %s45, 1
          %s144 = smul.addr %s143, 16
          %s145 = scalar_lea.vmem [#allocation2], %s144
          %s146 = sadd.s32 %s24, %s25
          %p147 = scmp.lt.s32.totalorder %s146, 0
          %s148 = scalar_select %p147, %s146, 0
          %s149 = smul.u32 2, %s148
          %s151 = ssub.s32 256, 256
          %152 = vsyncadd %s142, %s151
          %s153 = smul.addr %s149, 128
          %s154 = scalar_lea.hbm %s0, %s153
          %s155 = sshll.u32 %s145, 4
          %s156 = int_to_ptr.vmem [resolvable:$true] %s155
          %161 = dma.hbm_to_vmem [thread:$0]  %s154, 256, %s156, %s142, 128, 128, 8
        $region20: #{tpu_custom_call.1} parent=15 // pred_fallthru
          _
        // Predicated region
        $region21: #{tpu_custom_call.1} parent=15 // pred_check
          %p162 = pneg %p87
        $region22: #{tpu_custom_call.1} parent=15 // pred_check_branch
          %164 = sbr.rel (%p162) target = $region24
        $region23: #{tpu_custom_call.1} parent=15 // pred_region
          %s165 = sand.u32 %s77, 1
          %s166 = scalar_lea.sflag [#allocation6], %s165
          %s167 = sand.u32 %s77, 1
          %s168 = smul.addr %s167, 16
          %s169 = scalar_lea.vmem [#allocation5], %s168
          %s170 = sadd.s32 %s24, %s25
          %p171 = scmp.lt.s32.totalorder %s170, 0
          %s172 = scalar_select %p171, %s170, 0
          %s173 = smul.u32 2, %s172
          %s175 = ssub.s32 256, 256
          %176 = vsyncadd %s166, %s175
          %s177 = smul.addr %s173, 128
          %s178 = scalar_lea.hbm %s1, %s177
          %s179 = sshll.u32 %s169, 4
          %s180 = int_to_ptr.vmem [resolvable:$true] %s179
          %185 = dma.hbm_to_vmem [thread:$0]  %s178, 256, %s180, %s166, 128, 128, 8
        $region24: #{tpu_custom_call.1} parent=15 // pred_fallthru
          _
      $region16: #{tpu_custom_call.1} parent=5 // pred_fallthru
        _
      %p186 = scmp.le.s32.totalorder 1, %s17
      %p187 = scmp.lt.s32.totalorder %s17, 3
      %p188 = pnand %p186, %p187
      %p189 = pneg %p188
      // Predicated region
      $region25: #{tpu_custom_call.1} parent=5 // pred_check
        _
      $region26: #{tpu_custom_call.1} parent=5 // pred_check_branch
        %191 = sbr.rel (%p188) target = $region28
      $region27: #{tpu_custom_call.1} parent=5 // pred_region
        %s192 = ssub.s32 %s17, 1
        %s193 = sand.u32 %s48, 1
        %s194 = scalar_lea.sflag [#allocation3], %s193
        %s195 = sand.u32 %s48, 1
        %s196 = smul.addr %s195, 16
        %s197 = scalar_lea.vmem [#allocation2], %s196
        // Predicated region
        $region29: #{tpu_custom_call.1} parent=27 // pred_check
          %p198 = pneg %p61
        $region30: #{tpu_custom_call.1} parent=27 // pred_check_branch
          %200 = sbr.rel (%p198) target = $region32
        $region31: #{tpu_custom_call.1} parent=27 // pred_region
          %201 = dma.done %s194, 256
        $region32: #{tpu_custom_call.1} parent=27 // pred_fallthru
          _
        %s202 = sand.u32 %s80, 1
        %s203 = scalar_lea.sflag [#allocation6], %s202
        %s204 = sand.u32 %s80, 1
        %s205 = smul.addr %s204, 16
        %s206 = scalar_lea.vmem [#allocation5], %s205
        // Predicated region
        $region33: #{tpu_custom_call.1} parent=27 // pred_check
          %p207 = pneg %p93
        $region34: #{tpu_custom_call.1} parent=27 // pred_check_branch
          %209 = sbr.rel (%p207) target = $region36
        $region35: #{tpu_custom_call.1} parent=27 // pred_region
          %210 = dma.done %s203, 256
        $region36: #{tpu_custom_call.1} parent=27 // pred_fallthru
          _
        %s211 = sand.u32 %s48, 1
        %s212 = scalar_lea.sflag [#allocation3], %s211
        %s213 = sand.u32 %s48, 1
        %s214 = smul.addr %s213, 16
        %s215 = scalar_lea.vmem [#allocation2], %s214
        %p216 = pneg %p61
        %p217 = pneg %p58
        %s218 = sand.u32 %s80, 1
        %s219 = scalar_lea.sflag [#allocation6], %s218
        %s220 = sand.u32 %s80, 1
        %s221 = smul.addr %s220, 16
        %s222 = scalar_lea.vmem [#allocation5], %s221
        %p223 = pneg %p93
        %p224 = pneg %p90
        %p225 = pneg %p119
        %p226 = pneg %p116
        %s227 = sand.u32 %s106, 1
        %s228 = scalar_lea.sflag [#allocation4], %s227
        %s229 = sand.u32 %s106, 1
        %s230 = smul.addr %s229, 8
        %s231 = scalar_lea.vmem [#allocation7], %s230
        %s232 = sadd.s32 %s26, %s27
        %p233 = scmp.lt.s32.totalorder %s232, 0
        %s234 = scalar_select %p233, %s232, 0
        %s235 = smul.u32 2, %s234
        %s236 = sadd.s32 %s26, %s27
        %p237 = scmp.lt.s32.totalorder %s236, 0
        %s238 = scalar_select %p237, %s236, 0
        %s239 = smul.u32 2, %s238
        %p240 = scmp.eq.s32.totalorder %s27, 0
        // Predicated region
        $region37: #{tpu_custom_call.1} parent=27 // pred_check
          %p241 = pneg %p240
        $region38: #{tpu_custom_call.1} parent=27 // pred_check_branch
          %243 = sbr.rel (%p241) target = $region40
        $region39: #{tpu_custom_call.1} parent=27 // pred_region
          %244 = vst [vmem:[%s231] sm:$0xff] 0.0
        $region40: #{tpu_custom_call.1} parent=27 // pred_fallthru
          _
        %s245 = sadd.s32 %s26, %s27
        %v246 = vld [vmem:[%s197] sm:$0xff]
        %v247 = vld [vmem:[%s197 + $0x8] sm:$0xff]
        %v248 = vld [vmem:[%s206] sm:$0xff]
        %v249 = vld [vmem:[%s206 + $0x8] sm:$0xff]
        %v250 = vlaneseq
        %v251 = vshrl.u32 %v250, 7
        %v252 = vadd.s32 %v251, 8
        %v253 = vlaneseq
        %v254 = vand.u32 %v253, 127
        %v255 = vmul.u32 %v251, 128
        %v256 = vmul.u32 %v252, 128
        %v257 = vadd.s32 %v255, %v254
        %v258 = vadd.s32 %v256, %v254
        %s259 = smul.u32 %s245, 2048
        %s260 = ssub.s32 2048, %s259
        %v261 = vstv %s260
        %vm262 = vcmp.lt.s32.totalorder %v257, %v261
        %vm263 = vcmp.lt.s32.totalorder %v258, %v261
        %v264 = vsel %vm262, %v246, 0.0
        %v265 = vsel %vm263, %v247, 0.0
        %v266 = vsel %vm262, %v248, 0.0
        %v267 = vsel %vm263, %v249, 0.0
        %v268 = vadd.f32 %v266, 0.01
        %v269 = vadd.f32 %v267, 0.01
        %v270 = vrcp.pop %v268
        %v271 = vmul.f32 1.0, %v270
        %v272 = vrcp.pop %v269
        %v273 = vmul.f32 1.0, %v272
        %v274 = vsub.f32 %v264, %v266
        %v275 = vsub.f32 %v265, %v267
        %v276 = vmul.f32 %v274, %v271
        %v277 = vmul.f32 %v275, %v273
        %v278 = vand.u32 2147483647, %v276
        %v279 = vand.u32 2147483647, %v277
        %v280 = vadd.f32 %v278, %v279
        %v281 = vld [vmem:[%s231] sm:$0xff]
        %v282 = vadd.f32 %v281, %v280
        %283 = vst [vmem:[%s231] sm:$0xff] %v282
        %s284 = sand.u32 %s106, 1
        %s285 = scalar_lea.sflag [#allocation4], %s284
        %s286 = sand.u32 %s106, 1
        %s287 = smul.addr %s286, 8
        %s288 = scalar_lea.vmem [#allocation7], %s287
        // Predicated region
        $region41: #{tpu_custom_call.1} parent=27 // pred_check
          %p289 = pneg %p116
        $region42: #{tpu_custom_call.1} parent=27 // pred_check_branch
          %291 = sbr.rel (%p289) target = $region44
        $region43: #{tpu_custom_call.1} parent=27 // pred_region
          %s293 = ssub.s32 128, 128
          %294 = vsyncadd %s285, %s293
          %s295 = smul.addr %s26, 128
          %s296 = scalar_lea.hbm %s2, %s295
          %s298 = sshll.u32 %s288, 4
          %s299 = int_to_ptr.vmem [resolvable:$true] %s298
          %301 = dma.vmem_to_hbm [thread:$0]  %s299, 128, %s296, %s285
        $region44: #{tpu_custom_call.1} parent=27 // pred_fallthru
          _
      $region28: #{tpu_custom_call.1} parent=5 // pred_fallthru
        _
      %p302 = scmp.le.s32.totalorder 2, %s17
      // Predicated region
      $region45: #{tpu_custom_call.1} parent=5 // pred_check
        %p303 = pneg %p302
      $region46: #{tpu_custom_call.1} parent=5 // pred_check_branch
        %305 = sbr.rel (%p303) target = $region48
      $region47: #{tpu_custom_call.1} parent=5 // pred_region
        %s306 = ssub.s32 %s17, 2
        // Predicated region
        $region49: #{tpu_custom_call.1} parent=47 // pred_check
          %p307 = pneg %p122
        $region50: #{tpu_custom_call.1} parent=47 // pred_check_branch
          %309 = sbr.rel (%p307) target = $region52
        $region51: #{tpu_custom_call.1} parent=47 // pred_region
          %s310 = sand.u32 %s107, 1
          %s311 = scalar_lea.sflag [#allocation4], %s310
          %s312 = sand.u32 %s107, 1
          %s313 = smul.addr %s312, 8
          %s314 = scalar_lea.vmem [#allocation7], %s313
          %315 = dma.done %s311, 128
        $region52: #{tpu_custom_call.1} parent=47 // pred_fallthru
          _
      $region48: #{tpu_custom_call.1} parent=5 // pred_fallthru
        _
    $region6: #{tpu_custom_call.1} parent=1 // loop_footer
      %s21 = sadd.s32 1, %s17
    $region7: #{tpu_custom_call.1} parent=1 // loop_footer_branch
      %16 = sbr.rel target = $region3
    $region8: #{tpu_custom_call.1} parent=1 // loop_exit
      _
    %316 = vsyncpa [#allocation3], 1
    %s317 = scalar_lea.sflag [#allocation3], 1
    %318 = vsyncpa %s317, 1
    %319 = vsyncpa [#allocation6], 1
    %s320 = scalar_lea.sflag [#allocation6], 1
    %321 = vsyncpa %s320, 1
    %322 = vsyncpa [#allocation4], 1
    %s323 = scalar_lea.sflag [#allocation4], 1
    %324 = vsyncpa %s323, 1

</llo_original>
